<compile_context>
chip_gen: v7x
topology: tpu7x:2x2x1
jax: 0.10.0
libtpu: 0.0.40
codegen_flags: <defaults>
</compile_context>

<pallas_src>
import numpy as np
import jax
import jax.numpy as jnp
from jax.experimental import pallas as pl
from jax.experimental.pallas import tpu as pltpu

D_MODEL = 512          # Decoder default d_model
MAX_LEN = 1000
DROPOUT_P = 0.1
# keep an element iff its uint32 random bits >= p * 2^32  (keep-prob = 1 - p)
_DROP_THRESHOLD = np.uint32(round(DROPOUT_P * 2.0 ** 32))
_KEEP_SCALE = np.float32(1.0 / (1.0 - DROPOUT_P))


def make_pos_table(d_model: int, max_len: int) -> jnp.ndarray:
    """Deterministic parameter init, identical to the module's __init__."""
    pos_table = np.array(
        [
            [pos / np.power(10000, 2 * i / d_model) for i in range(d_model)]
            if pos != 0
            else np.zeros(d_model)
            for pos in range(max_len)
        ]
    )
    pos_table[1:, 0::2] = np.sin(pos_table[1:, 0::2])
    pos_table[1:, 1::2] = np.cos(pos_table[1:, 1::2])
    return jnp.asarray(pos_table, dtype=jnp.float32)


def _pe_dropout_kernel(x_ref, bits_ref, pos_ref, o_ref):
    # x_ref / bits_ref / o_ref: (bb, S, D) tile; pos_ref: (S, D), resident.
    y = x_ref[...] + pos_ref[...][None, :, :]            # broadcast add over batch
    keep = bits_ref[...] >= _DROP_THRESHOLD              # single integer compare
    o_ref[...] = (y * jnp.where(keep, _KEEP_SCALE, jnp.float32(0.0))).astype(o_ref.dtype)


def positional_encoding_forward(enc_inputs: jnp.ndarray,
                                pos_table: jnp.ndarray,
                                dropout_key: jax.Array) -> jnp.ndarray:
    """enc_inputs: [B, S, D] float32; returns dropout(enc_inputs + pos_table[:S])."""
    B, S, D = enc_inputs.shape
    pos = pos_table[:S, :]                                   # glue: static slice
    # Dropout randomness generated outside the kernel (portable to interpret
    # mode); uniform uint32 bits, thresholded inside the kernel.
    bits = jax.random.bits(dropout_key, (B, S, D), dtype=jnp.uint32)

    # Largest batch block whose f32 tile stays <= ~2 MiB: with double-buffered
    # input + bits + output that is <= ~12 MiB of VMEM, safe even on v7x (64 MiB).
    row_bytes = S * D * 4
    bb = max(1, min(B, (2 * 1024 * 1024) // max(row_bytes, 1)))
    grid = (pl.cdiv(B, bb),)

    return pl.pallas_call(
        _pe_dropout_kernel,
        out_shape=jax.ShapeDtypeStruct((B, S, D), enc_inputs.dtype),
        grid=grid,
        in_specs=[
            pl.BlockSpec((bb, S, D), lambda i: (i, 0, 0)),
            pl.BlockSpec((bb, S, D), lambda i: (i, 0, 0)),
            pl.BlockSpec((S, D), lambda i: (0, 0)),          # constant -> resident
        ],
        out_specs=pl.BlockSpec((bb, S, D), lambda i: (i, 0, 0)),
        compiler_params=pltpu.CompilerParams(
            dimension_semantics=("parallel",),               # independent steps
        ),
    )(enc_inputs, bits, pos)


if __name__ == "__main__":
    B, S, D = 2, 8, D_MODEL

    root = jax.random.PRNGKey(0)
    k_x, k_drop = jax.random.split(root)
    enc_inputs = jax.random.normal(k_x, (B, S, D), dtype=jnp.float32)
    pos_table = make_pos_table(D_MODEL, MAX_LEN)

    # Reference of the deterministic part (computed before the kernel call).
    ref = (enc_inputs + pos_table[:S][None, :, :]) * _KEEP_SCALE

    out = positional_encoding_forward(enc_inputs, pos_table, k_drop)
    out = jax.block_until_ready(out)

    # Sanity: shape/dtype preserved, values finite, every surviving element
    # equals (x + pos) / (1 - p) exactly, and the keep rate is ~0.9.
    assert out.shape == (B, S, D) and out.dtype == jnp.float32
    assert bool(jnp.all(jnp.isfinite(out)))
    surviving = out != 0.0
    assert bool(jnp.all(jnp.where(surviving, jnp.abs(out - ref) < 1e-4, True)))
    keep_rate = float(jnp.mean(surviving.astype(jnp.float32)))
    assert 0.8 < keep_rate < 0.97, keep_rate

    print("KERNEL_OK")
</pallas_src>

<mosaic_0001>
module attributes {stable_mosaic.version = 11 : i64} {
  func.func @_pe_dropout_kernel(%arg0: i32, %arg1: memref<2x8x512xf32, #tpu.memory_space<vmem>>, %arg2: memref<2x8x512xi32, #tpu.memory_space<vmem>>, %arg3: memref<8x512xf32, #tpu.memory_space<vmem>>, %arg4: memref<2x8x512xf32, #tpu.memory_space<vmem>>) attributes {dimension_semantics = [#tpu.dimension_semantics<parallel>], iteration_bounds = array<i64: 1>, scalar_prefetch = 0 : i64, scratch_operands = 0 : i64, tpu.core_type = #tpu.core_type<tc>, window_params = [{transform_indices = @transform_0, window_bounds = array<i64: 2, 8, 512>}, {transform_indices = @transform_1, window_bounds = array<i64: 2, 8, 512>}, {pipeline_mode = #tpu.pipeline_mode<synchronous>, transform_indices = @transform_2, window_bounds = array<i64: 8, 512>}, {transform_indices = @transform_3, window_bounds = array<i64: 2, 8, 512>}]} {
    %c0 = arith.constant 0 : index
    %c0_0 = arith.constant 0 : index
    %c0_1 = arith.constant 0 : index
    %0 = vector.load %arg1[%c0, %c0_0, %c0_1] : memref<2x8x512xf32, #tpu.memory_space<vmem>>, vector<2x8x512xf32>
    %c0_2 = arith.constant 0 : index
    %c0_3 = arith.constant 0 : index
    %1 = vector.load %arg3[%c0_2, %c0_3] : memref<8x512xf32, #tpu.memory_space<vmem>>, vector<8x512xf32>
    %2 = vector.shape_cast %1 : vector<8x512xf32> to vector<1x8x512xf32>
    %3 = vector.broadcast %2 : vector<1x8x512xf32> to vector<2x8x512xf32>
    %4 = arith.addf %0, %3 : vector<2x8x512xf32>
    %c0_4 = arith.constant 0 : index
    %c0_5 = arith.constant 0 : index
    %c0_6 = arith.constant 0 : index
    %5 = vector.load %arg2[%c0_4, %c0_5, %c0_6] : memref<2x8x512xi32, #tpu.memory_space<vmem>>, vector<2x8x512xi32>
    %c429496730_i32 = arith.constant 429496730 : i32
    %6 = vector.broadcast %c429496730_i32 : i32 to vector<2x8x512xi32>
    %7 = arith.cmpi uge, %5, %6 : vector<2x8x512xi32>
    %cst = arith.constant 1.11111116 : f32
    %cst_7 = arith.constant 0.000000e+00 : f32
    %8 = vector.broadcast %cst : f32 to vector<2x8x512xf32>
    %9 = vector.broadcast %cst_7 : f32 to vector<2x8x512xf32>
    %10 = arith.select %7, %8, %9 : vector<2x8x512xi1>, vector<2x8x512xf32>
    %11 = arith.mulf %4, %10 : vector<2x8x512xf32>
    %c0_8 = arith.constant 0 : index
    %c0_9 = arith.constant 0 : index
    %c0_10 = arith.constant 0 : index
    %12 = vector.load %arg4[%c0_8, %c0_9, %c0_10] : memref<2x8x512xf32, #tpu.memory_space<vmem>>, vector<2x8x512xf32>
    tpu.vector_store %arg4[%c0_8, %c0_9, %c0_10], %11 {strides = array<i32>} : memref<2x8x512xf32, #tpu.memory_space<vmem>>, vector<2x8x512xf32>,
    return
  }
  func.func @transform_0(%arg0: i32) -> (i32, i32, i32) {
    %c0_i32 = arith.constant 0 : i32
    %c0_i32_0 = arith.constant 0 : i32
    %c0_i32_1 = arith.constant 0 : i32
    return %arg0, %c0_i32, %c0_i32_0 : i32, i32, i32
  }
  func.func @transform_1(%arg0: i32) -> (i32, i32, i32) {
    %c0_i32 = arith.constant 0 : i32
    %c0_i32_0 = arith.constant 0 : i32
    %c0_i32_1 = arith.constant 0 : i32
    return %arg0, %c0_i32, %c0_i32_0 : i32, i32, i32
  }
  func.func @transform_2(%arg0: i32) -> (i32, i32) {
    %c0_i32 = arith.constant 0 : i32
    %c0_i32_0 = arith.constant 0 : i32
    %c0_i32_1 = arith.constant 0 : i32
    return %c0_i32, %c0_i32_0 : i32, i32
  }
  func.func @transform_3(%arg0: i32) -> (i32, i32, i32) {
    %c0_i32 = arith.constant 0 : i32
    %c0_i32_0 = arith.constant 0 : i32
    %c0_i32_1 = arith.constant 0 : i32
    return %arg0, %c0_i32, %c0_i32_0 : i32, i32, i32
  }
}

</mosaic_0001>

<llo_original>
// kernel: tpu_custom_call.1
$region0: #{tpu_custom_call.1}
  #allocation0 [shape = 'u32[]', space=smem, size = 0x4, offset = 0x4, fixed_abs, tag = 'smem constant byte address 0x4 - core index']
  #allocation1 [shape = 'u32[144,128]{1,0:T(1,128)}', space=vmem, size = 0x12000, scoped, tag = 'internal scratch']
  %s0 = inlined_call_operand.hbm [shape: f32[2,8,512], index: 0, kind: input, shape index: {}]
  %s1 = inlined_call_operand.hbm [shape: u32[2,8,512], index: 1, kind: input, shape index: {}]
  %s2 = inlined_call_operand.hbm [shape: f32[8,512], index: 2, kind: input, shape index: {}]
  %s3 = inlined_call_operand.hbm [shape: f32[2,8,512], index: 3, kind: output, shape index: {}]
  %s4 = sld [smem:[#allocation0]]
  $region34: #{tpu_custom_call.1} parent=0
    _
  %s6 = ssub.s32 1, %s4
  %s7 = scalar_select 0, %s6, %s4
  $region1: #{tpu_custom_call.1} parent=0
    #allocation2 [shape = 'u8[32768]{0}', space=vmem, size = 0x8000, scoped, tag = 'input window, operand 0, single buffered']
    #allocation3 [shape = 's32[1]{0}', space=sflag, size = 0x4, scoped, tag = 'scoped memory for tpu_custom_call.1']
    #allocation4 [shape = 's32[1]{0}', space=sflag, size = 0x4, scoped, tag = 'scoped memory for tpu_custom_call.1']
    #allocation5 [shape = 'u8[32768]{0}', space=vmem, size = 0x8000, scoped, tag = 'input window, operand 1, single buffered']
    #allocation6 [shape = 's32[1]{0}', space=sflag, size = 0x4, scoped, tag = 'scoped memory for tpu_custom_call.1']
    #allocation7 [shape = 'u8[16384]{0}', space=vmem, size = 0x4000, scoped, tag = 'input window, operand 2, single buffered']
    #allocation8 [shape = 'u8[32768]{0}', space=vmem, size = 0x8000, scoped, tag = 'output window, operand 0, single buffered']
    %8 = vsyncpa [#allocation3], 0
    %9 = vsyncpa [#allocation6], 0
    %10 = vsyncpa [#allocation4], 0
    // Predicated region
    $region2: #{tpu_custom_call.1} parent=1 // pred_check
      _
    $region3: #{tpu_custom_call.1} parent=1 // pred_check_branch
      %12 = sbr.rel (0) target = $region5
    $region4: #{tpu_custom_call.1} parent=1 // pred_region
      %s14 = ssub.s32 1024, 1024
      %15 = vsyncadd [#allocation3], %s14
      %s16 = sshll.u32 [#allocation2], 4
      %s17 = int_to_ptr.vmem [resolvable:$true] %s16
      %22 = dma.hbm_to_vmem [thread:$0]  %s0, 1024, %s17, [#allocation3], 512, 512, 32
    $region5: #{tpu_custom_call.1} parent=1 // pred_fallthru
      _
    // Predicated region
    $region6: #{tpu_custom_call.1} parent=1 // pred_check
      _
    $region7: #{tpu_custom_call.1} parent=1 // pred_check_branch
      %24 = sbr.rel (0) target = $region9
    $region8: #{tpu_custom_call.1} parent=1 // pred_region
      %s26 = ssub.s32 1024, 1024
      %27 = vsyncadd [#allocation6], %s26
      %s28 = sshll.u32 [#allocation5], 4
      %s29 = int_to_ptr.vmem [resolvable:$true] %s28
      %34 = dma.hbm_to_vmem [thread:$0]  %s1, 1024, %s29, [#allocation6], 512, 512, 32
    $region9: #{tpu_custom_call.1} parent=1 // pred_fallthru
      _
    // Predicated region
    $region10: #{tpu_custom_call.1} parent=1 // pred_check
      _
    $region11: #{tpu_custom_call.1} parent=1 // pred_check_branch
      %36 = sbr.rel (0) target = $region13
    $region12: #{tpu_custom_call.1} parent=1 // pred_region
      %s38 = ssub.s32 512, 512
      %39 = vsyncadd [#allocation6], %s38
      %s41 = sshll.u32 [#allocation7], 4
      %s42 = int_to_ptr.vmem [resolvable:$true] %s41
      %44 = dma.hbm_to_vmem [thread:$0]  %s2, 512, %s42, [#allocation6]
    $region13: #{tpu_custom_call.1} parent=1 // pred_fallthru
      _
    // Predicated region
    $region14: #{tpu_custom_call.1} parent=1 // pred_check
      _
    $region15: #{tpu_custom_call.1} parent=1 // pred_check_branch
      %46 = sbr.rel (0) target = $region17
    $region16: #{tpu_custom_call.1} parent=1 // pred_region
      %47 = dma.done [#allocation3], 1024
    $region17: #{tpu_custom_call.1} parent=1 // pred_fallthru
      _
    // Predicated region
    $region18: #{tpu_custom_call.1} parent=1 // pred_check
      _
    $region19: #{tpu_custom_call.1} parent=1 // pred_check_branch
      %49 = sbr.rel (0) target = $region21
    $region20: #{tpu_custom_call.1} parent=1 // pred_region
      %50 = dma.done [#allocation6], 1024
    $region21: #{tpu_custom_call.1} parent=1 // pred_fallthru
      _
    // Predicated region
    $region22: #{tpu_custom_call.1} parent=1 // pred_check
      _
    $region23: #{tpu_custom_call.1} parent=1 // pred_check_branch
      %52 = sbr.rel (0) target = $region25
    $region24: #{tpu_custom_call.1} parent=1 // pred_region
      %53 = dma.done [#allocation6], 512
    $region25: #{tpu_custom_call.1} parent=1 // pred_fallthru
      _
    %v54 = vld [vmem:[#allocation2] sm:$0xff]
    %v55 = vld [vmem:[#allocation2 + $0x8] sm:$0xff]
    %v56 = vld [vmem:[#allocation2 + $0x10] sm:$0xff]
    %v57 = vld [vmem:[#allocation2 + $0x18] sm:$0xff]
    %v58 = vld [vmem:[#allocation2 + $0x20] sm:$0xff]
    %v59 = vld [vmem:[#allocation2 + $0x28] sm:$0xff]
    %v60 = vld [vmem:[#allocation2 + $0x30] sm:$0xff]
    %v61 = vld [vmem:[#allocation2 + $0x38] sm:$0xff]
    %v62 = vld [vmem:[#allocation7] sm:$0xff]
    %v63 = vld [vmem:[#allocation7 + $0x8] sm:$0xff]
    %v64 = vld [vmem:[#allocation7 + $0x10] sm:$0xff]
    %v65 = vld [vmem:[#allocation7 + $0x18] sm:$0xff]
    %v66 = vadd.f32 %v54, %v62
    %v67 = vadd.f32 %v55, %v63
    %v68 = vadd.f32 %v56, %v64
    %v69 = vadd.f32 %v57, %v65
    %v70 = vadd.f32 %v58, %v62
    %v71 = vadd.f32 %v59, %v63
    %v72 = vadd.f32 %v60, %v64
    %v73 = vadd.f32 %v61, %v65
    %v74 = vld [vmem:[#allocation5] sm:$0xff]
    %v75 = vld [vmem:[#allocation5 + $0x8] sm:$0xff]
    %v76 = vld [vmem:[#allocation5 + $0x10] sm:$0xff]
    %v77 = vld [vmem:[#allocation5 + $0x18] sm:$0xff]
    %v78 = vld [vmem:[#allocation5 + $0x20] sm:$0xff]
    %v79 = vld [vmem:[#allocation5 + $0x28] sm:$0xff]
    %v80 = vld [vmem:[#allocation5 + $0x30] sm:$0xff]
    %v81 = vld [vmem:[#allocation5 + $0x38] sm:$0xff]
    %vm82 = vcmp.ge.u32.totalorder %v74, 429496730
    %vm83 = vcmp.ge.u32.totalorder %v75, 429496730
    %vm84 = vcmp.ge.u32.totalorder %v76, 429496730
    %vm85 = vcmp.ge.u32.totalorder %v77, 429496730
    %vm86 = vcmp.ge.u32.totalorder %v78, 429496730
    %vm87 = vcmp.ge.u32.totalorder %v79, 429496730
    %vm88 = vcmp.ge.u32.totalorder %v80, 429496730
    %vm89 = vcmp.ge.u32.totalorder %v81, 429496730
    %v90 = vsel %vm82, 1.1111112, 0.0
    %v91 = vsel %vm83, 1.1111112, 0.0
    %v92 = vsel %vm84, 1.1111112, 0.0
    %v93 = vsel %vm85, 1.1111112, 0.0
    %v94 = vsel %vm86, 1.1111112, 0.0
    %v95 = vsel %vm87, 1.1111112, 0.0
    %v96 = vsel %vm88, 1.1111112, 0.0
    %v97 = vsel %vm89, 1.1111112, 0.0
    %v98 = vmul.f32 %v66, %v90
    %v99 = vmul.f32 %v67, %v91
    %v100 = vmul.f32 %v68, %v92
    %v101 = vmul.f32 %v69, %v93
    %v102 = vmul.f32 %v70, %v94
    %v103 = vmul.f32 %v71, %v95
    %v104 = vmul.f32 %v72, %v96
    %v105 = vmul.f32 %v73, %v97
    %106 = vst [vmem:[#allocation8] sm:$0xff] %v98
    %107 = vst [vmem:[#allocation8 + $0x8] sm:$0xff] %v99
    %108 = vst [vmem:[#allocation8 + $0x10] sm:$0xff] %v100
    %109 = vst [vmem:[#allocation8 + $0x18] sm:$0xff] %v101
    %110 = vst [vmem:[#allocation8 + $0x20] sm:$0xff] %v102
    %111 = vst [vmem:[#allocation8 + $0x28] sm:$0xff] %v103
    %112 = vst [vmem:[#allocation8 + $0x30] sm:$0xff] %v104
    %113 = vst [vmem:[#allocation8 + $0x38] sm:$0xff] %v105
    // Predicated region
    $region26: #{tpu_custom_call.1} parent=1 // pred_check
      _
    $region27: #{tpu_custom_call.1} parent=1 // pred_check_branch
      %115 = sbr.rel (0) target = $region29
    $region28: #{tpu_custom_call.1} parent=1 // pred_region
      %s117 = ssub.s32 1024, 1024
      %118 = vsyncadd [#allocation4], %s117
      %s119 = sshll.u32 [#allocation8], 4
      %s120 = int_to_ptr.vmem [resolvable:$true] %s119
      %125 = dma.vmem_to_hbm [thread:$0]  %s120, 1024, %s3, [#allocation4], 512, 512, 32
    $region29: #{tpu_custom_call.1} parent=1 // pred_fallthru
      _
    // Predicated region
    $region30: #{tpu_custom_call.1} parent=1 // pred_check
      _
    $region31: #{tpu_custom_call.1} parent=1 // pred_check_branch
      %127 = sbr.rel (0) target = $region33
    $region32: #{tpu_custom_call.1} parent=1 // pred_region
      %128 = dma.done [#allocation4], 1024
    $region33: #{tpu_custom_call.1} parent=1 // pred_fallthru
      _
    %129 = vsyncpa [#allocation3], 1
    %130 = vsyncpa [#allocation6], 1
    %131 = vsyncpa [#allocation4], 1

</llo_original>
